<compile_context>
chip_gen: v6e
topology: v6e:2x2x1
jax: 0.10.0
libtpu: 0.0.40
codegen_flags: <defaults>
</compile_context>

<pallas_src>
import jax
import jax.numpy as jnp
from jax import lax
from jax.experimental import pallas as pl
from jax.experimental.pallas import tpu as pltpu


# ---------------------------------------------------------------------------
# VMEM policy: one conservative setting that is legal on v5e / v6e / v7x.
# ---------------------------------------------------------------------------
_VMEM_LIMIT_BYTES = 32 * 1024 * 1024   # explicit scoped-VMEM limit for all calls
_TILE_VMEM_BUDGET = 20 * 1024 * 1024   # what tile sizing may spend (headroom left)
_FUSED_VMEM_BUDGET = 8 * 1024 * 1024   # threshold for the single-call fast path
_MAX_TILE_LANES = 1024                 # 512-1024 lanes ~= 85% of HBM roofline


def _round_to_128(x):
    return max(128, (int(x) // 128) * 128)


def _pick_tile_hw(hw_pad, per_lane_bytes, resident_bytes):
    """Largest multiple-of-128 divisor of hw_pad that keeps the pipelined
    working set under the VMEM budget; keeps >= 2 tiles when possible so a
    'parallel' grid axis actually splits across both v7x TensorCores."""
    budget = max(_TILE_VMEM_BUDGET - resident_bytes, 128 * per_lane_bytes)
    cap = min(_MAX_TILE_LANES, budget // max(per_lane_bytes, 1), hw_pad)
    if hw_pad >= 256:
        cap = min(cap, hw_pad // 2)
    t = _round_to_128(cap)
    while t > 128 and hw_pad % t:
        t -= 128
    return t


# ---------------------------------------------------------------------------
# Fused single-call fast path (small HW): reduce + tiny linears + map in one
# un-gridded pallas_call.  Everything lives as (C, HW), lane-dense.
# ---------------------------------------------------------------------------
def _fused_body(img32, img_prob, wv_ref, w_wv_ref, b_wv_ref, w_ai_ref, b_ai_ref,
                w_ci_ref, b_ci_ref, w_out_ref, b_out_ref, out_ref):
    # wordvec / attended-image linears (M=1, tiny).
    wv_m = jnp.dot(w_wv_ref[...], wv_ref[...],
                   preferred_element_type=jnp.float32) + b_wv_ref[...]
    att_m = jnp.dot(w_ai_ref[...], img_prob,
                    preferred_element_type=jnp.float32) + b_ai_ref[...]
    scale = wv_m * att_m                                         # (D_map, 1)
    # 1x1 conv D_img -> D_map, lane-dense.
    img_mapped = jnp.dot(w_ci_ref[...], img32,
                         preferred_element_type=jnp.float32) + b_ci_ref[...]
    ewm = scale * img_mapped                                     # (D_map, HW)
    # F.normalize(dim=channel) fused with the N=1 output conv (kept off MXU).
    ss = jnp.sum(ewm * ewm, axis=0, keepdims=True)               # (1, HW)
    inv = lax.rsqrt(jnp.maximum(ss, 1e-24))                      # EUP
    proj = jnp.sum(ewm * w_out_ref[...], axis=0, keepdims=True)  # (1, HW)
    out_ref[...] = proj * inv + b_out_ref[...]                   # (1,1) broadcasts


def _fused_kernel_identity(img_ref, wv_ref, w_wv_ref, b_wv_ref, w_ai_ref,
                           b_ai_ref, w_ci_ref, b_ci_ref, w_out_ref, b_out_ref,
                           out_ref):
    # C_att == 1: Softmax2d over a single channel is identically 1.
    img32 = img_ref[...].astype(jnp.float32)
    img_prob = jnp.sum(img32, axis=1, keepdims=True)             # (D_img, 1)
    _fused_body(img32, img_prob, wv_ref, w_wv_ref, b_wv_ref, w_ai_ref, b_ai_ref,
                w_ci_ref, b_ci_ref, w_out_ref, b_out_ref, out_ref)


def _fused_kernel_softmax(att_ref, img_ref, wv_ref, w_wv_ref, b_wv_ref,
                          w_ai_ref, b_ai_ref, w_ci_ref, b_ci_ref, w_out_ref,
                          b_out_ref, out_ref):
    img32 = img_ref[...].astype(jnp.float32)
    att = att_ref[...]
    m = jnp.max(att, axis=0, keepdims=True)
    e = jnp.exp(att - m)
    p = e / jnp.sum(e, axis=0, keepdims=True)    # exact reciprocal (correctness)
    img_prob = jnp.sum(p * img32, axis=1, keepdims=True)
    _fused_body(img32, img_prob, wv_ref, w_wv_ref, b_wv_ref, w_ai_ref, b_ai_ref,
                w_ci_ref, b_ci_ref, w_out_ref, b_out_ref, out_ref)


# ---------------------------------------------------------------------------
# Tiled pass 1: spatial reduction.  Grid = (n_split 'parallel', tiles 'arbitrary').
# Full-width partials are accumulated in a VMEM scratch with plain VPU adds;
# the XLU cross-lane reduce runs once per split on the last inner step.
# ---------------------------------------------------------------------------
def _reduce_kernel_identity(img_ref, prob_ref, acc_ref):
    @pl.when(pl.program_id(1) == 0)
    def _init():
        acc_ref[...] = jnp.zeros_like(acc_ref)

    acc_ref[...] += img_ref[...].astype(jnp.float32)

    @pl.when(pl.program_id(1) == pl.num_programs(1) - 1)
    def _finish():
        prob_ref[0] = jnp.sum(acc_ref[...], axis=1, keepdims=True)


def _reduce_kernel_softmax(att_ref, img_ref, prob_ref, acc_ref):
    @pl.when(pl.program_id(1) == 0)
    def _init():
        acc_ref[...] = jnp.zeros_like(acc_ref)

    att = att_ref[...]                                    # (C_att, tile)
    m = jnp.max(att, axis=0, keepdims=True)
    e = jnp.exp(att - m)
    p = e / jnp.sum(e, axis=0, keepdims=True)             # exact reciprocal
    acc_ref[...] += p * img_ref[...].astype(jnp.float32)

    @pl.when(pl.program_id(1) == pl.num_programs(1) - 1)
    def _finish():
        prob_ref[0] = jnp.sum(acc_ref[...], axis=1, keepdims=True)


# ---------------------------------------------------------------------------
# Tiled pass 2: fused 1x1 conv (scale/b_ci pre-folded into the weights) +
# L2 normalize + output 1x1 conv as VPU multiply + channel reduce + EUP rsqrt.
# ---------------------------------------------------------------------------
def _map_kernel(img_ref, w_eff_ref, b_eff_ref, w_out_ref, b_out_ref, out_ref):
    ewm = jnp.dot(w_eff_ref[...], img_ref[...],
                  preferred_element_type=jnp.float32) + b_eff_ref[...]
    ss = jnp.sum(ewm * ewm, axis=0, keepdims=True)
    inv = lax.rsqrt(jnp.maximum(ss, 1e-24))
    proj = jnp.sum(ewm * w_out_ref[...], axis=0, keepdims=True)
    out_ref[...] = proj * inv + b_out_ref[0]              # b_out scalar in SMEM


# ---------------------------------------------------------------------------
# Wrapper
# ---------------------------------------------------------------------------
def transform_module_forward(params, input_attention_grid, wordvec, image_feat,
                             *, image_dtype=None, allow_fused=True):
    """input_attention_grid: (1, C_att, H, W); wordvec: (1, D_txt);
       image_feat: (1, D_img, H, W).  Returns (1, 1, H, W) float32.
       image_dtype=jnp.bfloat16 streams the image (and folded conv weight) in
       bf16 with f32 accumulation (useful on v6e/v7x when HBM-bound)."""
    n, c_att, H, W = input_attention_grid.shape
    nb, d_img, Hi, Wi = image_feat.shape
    assert n == 1 and nb == 1, "TransformModule hard-codes batch size 1"
    assert (Hi, Wi) == (H, W)
    assert c_att == 1 or c_att == d_img, \
        "Softmax2d output must broadcast against image_feat (C_att in {1, D_img})"
    d_map, d_txt = params["w_wv"].shape
    assert params["w_ci"].shape == (d_map, d_img)
    HW = H * W
    has_softmax = c_att != 1   # Softmax2d over one channel is the identity

    # NCHW with batch 1 is already channels-major: reshape only, no transpose.
    img2d = image_feat.reshape(d_img, HW).astype(jnp.float32)
    att2d = input_attention_grid.reshape(c_att, HW).astype(jnp.float32)

    # Small column-shaped parameters (all f32).
    wv_col = wordvec.reshape(d_txt, 1).astype(jnp.float32)
    b_wv_col = params["b_wv"].reshape(d_map, 1).astype(jnp.float32)
    b_ai_col = params["b_ai"].reshape(d_map, 1).astype(jnp.float32)
    b_ci_col = params["b_ci"].reshape(d_map, 1).astype(jnp.float32)
    w_out_col = params["w_out"].reshape(d_map, 1).astype(jnp.float32)
    b_out_11 = params["b_out"].reshape(1, 1).astype(jnp.float32)

    # ---- fused single-call fast path (everything in VMEM, one launch) -------
    fused_bytes = (HW * 4 * (d_img + d_map + (c_att if has_softmax else 0) + 4)
                   + 4 * d_map * (d_img + d_txt) + (64 << 10))
    if allow_fused and fused_bytes <= _FUSED_VMEM_BUDGET:
        cp = pltpu.CompilerParams(vmem_limit_bytes=_VMEM_LIMIT_BYTES)
        common = (img2d, wv_col,
                  params["w_wv"].astype(jnp.float32), b_wv_col,
                  params["w_ai"].astype(jnp.float32), b_ai_col,
                  params["w_ci"].astype(jnp.float32), b_ci_col,
                  w_out_col, b_out_11)
        if has_softmax:
            out2d = pl.pallas_call(
                _fused_kernel_softmax,
                out_shape=jax.ShapeDtypeStruct((1, HW), jnp.float32),
                compiler_params=cp,
            )(att2d, *common)
        else:
            out2d = pl.pallas_call(
                _fused_kernel_identity,
                out_shape=jax.ShapeDtypeStruct((1, HW), jnp.float32),
                compiler_params=cp,
            )(*common)
        return out2d.reshape(1, 1, H, W)

    # ---- general tiled two-pass path ----------------------------------------
    img_dtype = jnp.dtype(image_dtype) if image_dtype is not None else jnp.dtype(jnp.float32)
    img_bytes = img_dtype.itemsize

    # Zero-pad HW up to a lane multiple (exact: padded image columns are zero,
    # so they contribute nothing to pass 1; padded outputs are sliced off).
    hw_pad = -(-HW // 128) * 128
    pad = hw_pad - HW
    if pad:
        img2d = jnp.pad(img2d, ((0, 0), (0, pad)))
        if has_softmax:
            att2d = jnp.pad(att2d, ((0, 0), (0, pad)))
    img2d_t = img2d.astype(img_dtype)

    # ---- pass 1: img_prob[c] = sum_hw softmax(att)[c,hw] * img[c,hw] --------
    p1_lane_bytes = 2 * d_img * img_bytes + d_img * 4          # img dbl-buf + scratch
    if has_softmax:
        p1_lane_bytes += 4 * c_att * 4                         # att dbl-buf + temps
    tile1 = _pick_tile_hw(hw_pad, p1_lane_bytes, 0)
    n_tiles1 = hw_pad // tile1
    n_split = 2 if (n_tiles1 >= 2 and n_tiles1 % 2 == 0) else 1
    tiles_per_split = n_tiles1 // n_split

    p1_params = pltpu.CompilerParams(
        dimension_semantics=("parallel", "arbitrary"),
        vmem_limit_bytes=_VMEM_LIMIT_BYTES)
    img_spec1 = pl.BlockSpec((d_img, tile1),
                             lambda s, i: (0, s * tiles_per_split + i))
    out_spec1 = pl.BlockSpec((1, d_img, 1), lambda s, i: (s, 0, 0))
    scratch1 = [pltpu.VMEM((d_img, tile1), jnp.float32)]

    if has_softmax:
        att_spec1 = pl.BlockSpec((c_att, tile1),
                                 lambda s, i: (0, s * tiles_per_split + i))
        partial = pl.pallas_call(
            _reduce_kernel_softmax,
            out_shape=jax.ShapeDtypeStruct((n_split, d_img, 1), jnp.float32),
            grid=(n_split, tiles_per_split),
            in_specs=[att_spec1, img_spec1],
            out_specs=out_spec1,
            scratch_shapes=scratch1,
            compiler_params=p1_params,
        )(att2d, img2d_t)
    else:
        partial = pl.pallas_call(
            _reduce_kernel_identity,
            out_shape=jax.ShapeDtypeStruct((n_split, d_img, 1), jnp.float32),
            grid=(n_split, tiles_per_split),
            in_specs=[img_spec1],
            out_specs=out_spec1,
            scratch_shapes=scratch1,
            compiler_params=p1_params,
        )(img2d_t)
    img_prob = jnp.sum(partial, axis=0)                        # (d_img, 1)

    # ---- tiny spatial-independent linears + weight folding (wrapper side) ----
    wv_mapped = wordvec.astype(jnp.float32) @ params["w_wv"].T + params["b_wv"]
    att_feat = img_prob.reshape(1, d_img) @ params["w_ai"].T + params["b_ai"]
    scale = (att_feat * wv_mapped).reshape(d_map, 1)           # (d_map, 1)
    w_eff = (scale * params["w_ci"].astype(jnp.float32)).astype(img_dtype)
    b_eff = scale * b_ci_col                                   # (d_map, 1) f32
    b_out_1d = params["b_out"].reshape(1).astype(jnp.float32)

    # ---- pass 2: fused per-position pipeline, parallel over HW tiles ---------
    p2_resident = d_map * d_img * img_bytes + 3 * d_map * 4
    p2_lane_bytes = 2 * d_img * img_bytes + 2 * 4 + 2 * d_map * 4
    tile2 = _pick_tile_hw(hw_pad, p2_lane_bytes, p2_resident)
    n_tiles2 = hw_pad // tile2

    const_mode = pl.Buffered(buffer_count=1)   # constant-index weights: single-buffer
    out2d = pl.pallas_call(
        _map_kernel,
        out_shape=jax.ShapeDtypeStruct((1, hw_pad), jnp.float32),
        grid=(n_tiles2,),
        in_specs=[
            pl.BlockSpec((d_img, tile2), lambda i: (0, i)),              # image tile
            pl.BlockSpec((d_map, d_img), lambda i: (0, 0),
                         pipeline_mode=const_mode),                      # folded w_ci
            pl.BlockSpec((d_map, 1), lambda i: (0, 0),
                         pipeline_mode=const_mode),                      # folded b_ci
            pl.BlockSpec((d_map, 1), lambda i: (0, 0),
                         pipeline_mode=const_mode),                      # w_out column
            pl.BlockSpec(memory_space=pltpu.MemorySpace.SMEM),           # b_out scalar
        ],
        out_specs=pl.BlockSpec((1, tile2), lambda i: (0, i)),
        compiler_params=pltpu.CompilerParams(
            dimension_semantics=("parallel",),
            vmem_limit_bytes=_VMEM_LIMIT_BYTES),
    )(img2d_t, w_eff, b_eff, w_out_col, b_out_1d)

    if pad:
        out2d = out2d[:, :HW]
    return out2d.reshape(1, 1, H, W)


# ---------------------------------------------------------------------------
# Pure-JAX reference of the PyTorch forward (for validation).  Weights are in
# native PyTorch layouts: Linear (out,in), Conv2d 1x1 (out,in), biases (out,).
# ---------------------------------------------------------------------------
def _reference(params, att, wv, img):
    e = jnp.exp(att - jnp.max(att, axis=1, keepdims=True))
    p = e / jnp.sum(e, axis=1, keepdims=True)                 # Softmax2d
    img_prob = (p * img).sum(axis=(2, 3))                     # (1, D_img)
    wv_m = wv @ params["w_wv"].T + params["b_wv"]             # (1, D_map)
    att_m = img_prob @ params["w_ai"].T + params["b_ai"]      # (1, D_map)
    img_m = jnp.einsum("nchw,dc->ndhw", img, params["w_ci"]) \
        + params["b_ci"].reshape(1, -1, 1, 1)
    ewm = att_m.reshape(1, -1, 1, 1) * wv_m.reshape(1, -1, 1, 1) * img_m
    norm = jnp.sqrt(jnp.sum(ewm * ewm, axis=1, keepdims=True))
    normalized = ewm / jnp.maximum(norm, 1e-12)
    out = jnp.einsum("ndhw,od->nohw", normalized, params["w_out"]) \
        + params["b_out"].reshape(1, -1, 1, 1)
    return out


def init_params(key, D_txt, D_img, D_map):
    ks = jax.random.split(key, 8)
    s = 0.1
    return {
        "w_wv": jax.random.normal(ks[0], (D_map, D_txt), jnp.float32) * s,
        "b_wv": jax.random.normal(ks[1], (D_map,), jnp.float32) * s,
        "w_ai": jax.random.normal(ks[2], (D_map, D_img), jnp.float32) * s,
        "b_ai": jax.random.normal(ks[3], (D_map,), jnp.float32) * s,
        "w_ci": jax.random.normal(ks[4], (D_map, D_img), jnp.float32) * s,
        "b_ci": jax.random.normal(ks[5], (D_map,), jnp.float32) * s,
        "w_out": jax.random.normal(ks[6], (1, D_map), jnp.float32) * s,
        "b_out": jax.random.normal(ks[7], (1,), jnp.float32) * s,
    }


if __name__ == "__main__":
    D_txt, D_img, D_map = 32, 32, 32
    key = jax.random.PRNGKey(0)
    kp, k1, k2, k3, k4, k5, k6 = jax.random.split(key, 7)
    params = init_params(kp, D_txt, D_img, D_map)

    # 1) Shipped configuration (C_att == 1, 8x8): fused single-call fast path,
    #    Softmax2d over one channel statically skipped.
    H = W = 8
    wordvec = jax.random.normal(k2, (1, D_txt), jnp.float32)
    image_feat = jax.random.normal(k3, (1, D_img, H, W), jnp.float32)
    att1 = jax.random.normal(k1, (1, 1, H, W), jnp.float32)
    out1 = jax.block_until_ready(
        transform_module_forward(params, att1, wordvec, image_feat))
    ref1 = _reference(params, att1, wordvec, image_feat)
    assert out1.shape == (1, 1, H, W)
    assert jnp.allclose(out1, ref1, atol=2e-4, rtol=2e-4), "mismatch (fused, C_att=1)"

    # 2) Fused fast path with the in-kernel channel softmax (C_att == D_img).
    attC = jax.random.normal(k4, (1, D_img, H, W), jnp.float32)
    out2 = jax.block_until_ready(
        transform_module_forward(params, attC, wordvec, image_feat))
    ref2 = _reference(params, attC, wordvec, image_feat)
    assert jnp.allclose(out2, ref2, atol=2e-4, rtol=2e-4), "mismatch (fused, softmax)"

    # 3) Tiled two-pass path: non-128-divisible HW (zero padding), split reduce,
    #    single-buffered resident weights, SMEM scalar bias.
    H2 = W2 = 20
    image_feat2 = jax.random.normal(k5, (1, D_img, H2, W2), jnp.float32)
    attC2 = jax.random.normal(k6, (1, D_img, H2, W2), jnp.float32)
    out3 = jax.block_until_ready(
        transform_module_forward(params, attC2, wordvec, image_feat2,
                                 allow_fused=False))
    ref3 = _reference(params, attC2, wordvec, image_feat2)
    assert out3.shape == (1, 1, H2, W2)
    assert jnp.allclose(out3, ref3, atol=2e-4, rtol=2e-4), "mismatch (tiled, softmax)"

    # 4) Tiled path, identity attention, bf16 image/weight streaming
    #    (halved HBM traffic on v6e/v7x); f32 accumulation, looser tolerance.
    att1b = jax.random.normal(k1, (1, 1, H2, W2), jnp.float32)
    out4 = jax.block_until_ready(
        transform_module_forward(params, att1b, wordvec, image_feat2,
                                 allow_fused=False, image_dtype=jnp.bfloat16))
    ref4 = _reference(params, att1b, wordvec, image_feat2)
    assert jnp.allclose(out4, ref4, atol=5e-2, rtol=5e-2), "mismatch (tiled, bf16)"

    print("KERNEL_OK")
</pallas_src>

<mosaic_0001>
module attributes {stable_mosaic.version = 11 : i64} {
  func.func @_fused_kernel_identity(%arg0: memref<32x64xf32, #tpu.memory_space<vmem>>, %arg1: memref<32x1xf32, #tpu.memory_space<vmem>>, %arg2: memref<32x32xf32, #tpu.memory_space<vmem>>, %arg3: memref<32x1xf32, #tpu.memory_space<vmem>>, %arg4: memref<32x32xf32, #tpu.memory_space<vmem>>, %arg5: memref<32x1xf32, #tpu.memory_space<vmem>>, %arg6: memref<32x32xf32, #tpu.memory_space<vmem>>, %arg7: memref<32x1xf32, #tpu.memory_space<vmem>>, %arg8: memref<32x1xf32, #tpu.memory_space<vmem>>, %arg9: memref<1x1xf32, #tpu.memory_space<vmem>>, %arg10: memref<1x64xf32, #tpu.memory_space<vmem>>) attributes {dimension_semantics = [], scalar_prefetch = 0 : i64, scratch_operands = 0 : i64, tpu.core_type = #tpu.core_type<tc>} {
    %c0 = arith.constant 0 : index
    %c0_0 = arith.constant 0 : index
    %0 = vector.load %arg0[%c0, %c0_0] : memref<32x64xf32, #tpu.memory_space<vmem>>, vector<32x64xf32>
    %cst = arith.constant dense<0.000000e+00> : vector<32xf32>
    %1 = vector.multi_reduction <add>, %0, %cst [1] : vector<32x64xf32> to vector<32xf32>
    %2 = vector.shape_cast %1 : vector<32xf32> to vector<32x1xf32>
    %c0_1 = arith.constant 0 : index
    %c0_2 = arith.constant 0 : index
    %3 = vector.load %arg2[%c0_1, %c0_2] : memref<32x32xf32, #tpu.memory_space<vmem>>, vector<32x32xf32>
    %c0_3 = arith.constant 0 : index
    %c0_4 = arith.constant 0 : index
    %4 = vector.load %arg1[%c0_3, %c0_4] : memref<32x1xf32, #tpu.memory_space<vmem>>, vector<32x1xf32>
    %cst_5 = arith.constant dense<0.000000e+00> : vector<32x1xf32>
    %5 = tpu.matmul %3, %4, %cst_5 {dimension_numbers = #tpu.dot_dimension_numbers<[1], [0], [0], [1], [0, 0, 1, 1], [], []>} : vector<32x32xf32>, vector<32x1xf32>, vector<32x1xf32> -> vector<32x1xf32>
    %c0_6 = arith.constant 0 : index
    %c0_7 = arith.constant 0 : index
    %6 = vector.load %arg3[%c0_6, %c0_7] : memref<32x1xf32, #tpu.memory_space<vmem>>, vector<32x1xf32>
    %7 = arith.addf %5, %6 : vector<32x1xf32>
    %c0_8 = arith.constant 0 : index
    %c0_9 = arith.constant 0 : index
    %8 = vector.load %arg4[%c0_8, %c0_9] : memref<32x32xf32, #tpu.memory_space<vmem>>, vector<32x32xf32>
    %cst_10 = arith.constant dense<0.000000e+00> : vector<32x1xf32>
    %9 = tpu.matmul %8, %2, %cst_10 {dimension_numbers = #tpu.dot_dimension_numbers<[1], [0], [0], [1], [0, 0, 1, 1], [], []>} : vector<32x32xf32>, vector<32x1xf32>, vector<32x1xf32> -> vector<32x1xf32>
    %c0_11 = arith.constant 0 : index
    %c0_12 = arith.constant 0 : index
    %10 = vector.load %arg5[%c0_11, %c0_12] : memref<32x1xf32, #tpu.memory_space<vmem>>, vector<32x1xf32>
    %11 = arith.addf %9, %10 : vector<32x1xf32>
    %12 = arith.mulf %7, %11 : vector<32x1xf32>
    %c0_13 = arith.constant 0 : index
    %c0_14 = arith.constant 0 : index
    %13 = vector.load %arg6[%c0_13, %c0_14] : memref<32x32xf32, #tpu.memory_space<vmem>>, vector<32x32xf32>
    %cst_15 = arith.constant dense<0.000000e+00> : vector<32x64xf32>
    %14 = tpu.matmul %13, %0, %cst_15 {dimension_numbers = #tpu.dot_dimension_numbers<[1], [0], [0], [1], [0, 0, 1, 1], [], []>} : vector<32x32xf32>, vector<32x64xf32>, vector<32x64xf32> -> vector<32x64xf32>
    %c0_16 = arith.constant 0 : index
    %c0_17 = arith.constant 0 : index
    %15 = vector.load %arg7[%c0_16, %c0_17] : memref<32x1xf32, #tpu.memory_space<vmem>>, vector<32x1xf32>
    %16 = vector.broadcast %15 : vector<32x1xf32> to vector<32x64xf32>
    %17 = arith.addf %14, %16 : vector<32x64xf32>
    %18 = vector.broadcast %12 : vector<32x1xf32> to vector<32x64xf32>
    %19 = arith.mulf %18, %17 : vector<32x64xf32>
    %20 = arith.mulf %19, %19 : vector<32x64xf32>
    %cst_18 = arith.constant dense<0.000000e+00> : vector<64xf32>
    %21 = vector.multi_reduction <add>, %20, %cst_18 [0] : vector<32x64xf32> to vector<64xf32>
    %22 = vector.shape_cast %21 : vector<64xf32> to vector<1x64xf32>
    %cst_19 = arith.constant 1.000000e-24 : f32
    %23 = vector.broadcast %cst_19 : f32 to vector<1x64xf32>
    %24 = arith.maximumf %22, %23 : vector<1x64xf32>
    %25 = math.rsqrt %24 : vector<1x64xf32>
    %c0_20 = arith.constant 0 : index
    %c0_21 = arith.constant 0 : index
    %26 = vector.load %arg8[%c0_20, %c0_21] : memref<32x1xf32, #tpu.memory_space<vmem>>, vector<32x1xf32>
    %27 = vector.broadcast %26 : vector<32x1xf32> to vector<32x64xf32>
    %28 = arith.mulf %19, %27 : vector<32x64xf32>
    %cst_22 = arith.constant dense<0.000000e+00> : vector<64xf32>
    %29 = vector.multi_reduction <add>, %28, %cst_22 [0] : vector<32x64xf32> to vector<64xf32>
    %30 = vector.shape_cast %29 : vector<64xf32> to vector<1x64xf32>
    %31 = arith.mulf %30, %25 : vector<1x64xf32>
    %c0_23 = arith.constant 0 : index
    %c0_24 = arith.constant 0 : index
    %32 = vector.load %arg9[%c0_23, %c0_24] : memref<1x1xf32, #tpu.memory_space<vmem>>, vector<1x1xf32>
    %33 = vector.broadcast %32 : vector<1x1xf32> to vector<1x64xf32>
    %34 = arith.addf %31, %33 : vector<1x64xf32>
    %c0_25 = arith.constant 0 : index
    %c0_26 = arith.constant 0 : index
    %35 = vector.load %arg10[%c0_25, %c0_26] : memref<1x64xf32, #tpu.memory_space<vmem>>, vector<1x64xf32>
    tpu.vector_store %arg10[%c0_25, %c0_26], %34 {strides = array<i32>} : memref<1x64xf32, #tpu.memory_space<vmem>>, vector<1x64xf32>,
    return
  }
}

</mosaic_0001>

<llo_original>
// kernel: tpu_custom_call.1
$region0: #{tpu_custom_call.1}
  #allocation0 [shape = 'u32[]', space=smem, size = 0x4, offset = 0x4, fixed_abs, tag = 'smem constant byte address 0x4 - core index']
  #allocation1 [shape = 'u32[144,128]{1,0:T(1,128)}', space=vmem, size = 0x12000, scoped, tag = 'internal scratch']
  #allocation2 [shape = 'f32[1,1]{1,0:T(1,128)S(1)}', space=vmem, size = 0x200, scoped, tag = 'scoped memory for tpu_custom_call.1']
  %s0 = inlined_call_operand.vmem [shape: f32[32,64], index: 0, kind: input, shape index: {}]
  %s1 = inlined_call_operand.vmem [shape: f32[32,1], index: 1, kind: input, shape index: {}]
  %s2 = inlined_call_operand.vmem [shape: f32[32,32], index: 2, kind: input, shape index: {}]
  %s3 = inlined_call_operand.vmem [shape: f32[32,1], index: 3, kind: input, shape index: {}]
  %s4 = inlined_call_operand.vmem [shape: f32[32,32], index: 4, kind: input, shape index: {}]
  %s5 = inlined_call_operand.vmem [shape: f32[32,1], index: 5, kind: input, shape index: {}]
  %s6 = inlined_call_operand.vmem [shape: f32[32,32], index: 6, kind: input, shape index: {}]
  %s7 = inlined_call_operand.vmem [shape: f32[32,1], index: 7, kind: input, shape index: {}]
  %s8 = inlined_call_operand.vmem [shape: f32[32,1], index: 8, kind: input, shape index: {}]
  %s9 = inlined_call_operand.<no memory space> [shape: f32[1,1], index: 9, kind: input, shape index: {}]
  %s10 = inlined_call_operand.hbm [shape: f32[1,64], index: 10, kind: output, shape index: {}]
  %s11 = sld [smem:[#allocation0]]
  $region50: #{tpu_custom_call.1} parent=0
    _
  %s13 = ssub.s32 1, %s11
  %s14 = scalar_select 0, %s13, %s11
  %v15 = vstv %s9
  %16 = vst [vmem:[#allocation2] sm:$0x1] %v15
  $region1: #{tpu_custom_call.1} parent=0
    #allocation3 [shape = 'u8[512]{0}', space=vmem, size = 0x400, scoped, tag = 'output window, operand 0, single buffered']
    #allocation4 [shape = 's32[1]{0}', space=sflag, size = 0x4, scoped, tag = 'scoped memory for tpu_custom_call.1']
    %17 = vsyncpa [#allocation4], 0
    // Predicated region
    $region2: #{tpu_custom_call.1} parent=1 // pred_check
      _
    $region3: #{tpu_custom_call.1} parent=1 // pred_check_branch
      %19 = sbr.rel (0) target = $region5
    $region4: #{tpu_custom_call.1} parent=1 // pred_region
      _
    $region5: #{tpu_custom_call.1} parent=1 // pred_fallthru
      _
    // Predicated region
    $region6: #{tpu_custom_call.1} parent=1 // pred_check
      _
    $region7: #{tpu_custom_call.1} parent=1 // pred_check_branch
      %21 = sbr.rel (0) target = $region9
    $region8: #{tpu_custom_call.1} parent=1 // pred_region
      _
    $region9: #{tpu_custom_call.1} parent=1 // pred_fallthru
      _
    // Predicated region
    $region10: #{tpu_custom_call.1} parent=1 // pred_check
      _
    $region11: #{tpu_custom_call.1} parent=1 // pred_check_branch
      %23 = sbr.rel (0) target = $region13
    $region12: #{tpu_custom_call.1} parent=1 // pred_region
      _
    $region13: #{tpu_custom_call.1} parent=1 // pred_fallthru
      _
    // Predicated region
    $region14: #{tpu_custom_call.1} parent=1 // pred_check
      _
    $region15: #{tpu_custom_call.1} parent=1 // pred_check_branch
      %25 = sbr.rel (0) target = $region17
    $region16: #{tpu_custom_call.1} parent=1 // pred_region
      _
    $region17: #{tpu_custom_call.1} parent=1 // pred_fallthru
      _
    // Predicated region
    $region18: #{tpu_custom_call.1} parent=1 // pred_check
      _
    $region19: #{tpu_custom_call.1} parent=1 // pred_check_branch
      %27 = sbr.rel (0) target = $region21
    $region20: #{tpu_custom_call.1} parent=1 // pred_region
      _
    $region21: #{tpu_custom_call.1} parent=1 // pred_fallthru
      _
    // Predicated region
    $region22: #{tpu_custom_call.1} parent=1 // pred_check
      _
    $region23: #{tpu_custom_call.1} parent=1 // pred_check_branch
      %29 = sbr.rel (0) target = $region25
    $region24: #{tpu_custom_call.1} parent=1 // pred_region
      _
    $region25: #{tpu_custom_call.1} parent=1 // pred_fallthru
      _
    // Predicated region
    $region26: #{tpu_custom_call.1} parent=1 // pred_check
      _
    $region27: #{tpu_custom_call.1} parent=1 // pred_check_branch
      %31 = sbr.rel (0) target = $region29
    $region28: #{tpu_custom_call.1} parent=1 // pred_region
      _
    $region29: #{tpu_custom_call.1} parent=1 // pred_fallthru
      _
    // Predicated region
    $region30: #{tpu_custom_call.1} parent=1 // pred_check
      _
    $region31: #{tpu_custom_call.1} parent=1 // pred_check_branch
      %33 = sbr.rel (0) target = $region33
    $region32: #{tpu_custom_call.1} parent=1 // pred_region
      _
    $region33: #{tpu_custom_call.1} parent=1 // pred_fallthru
      _
    // Predicated region
    $region34: #{tpu_custom_call.1} parent=1 // pred_check
      _
    $region35: #{tpu_custom_call.1} parent=1 // pred_check_branch
      %35 = sbr.rel (0) target = $region37
    $region36: #{tpu_custom_call.1} parent=1 // pred_region
      _
    $region37: #{tpu_custom_call.1} parent=1 // pred_fallthru
      _
    // Predicated region
    $region38: #{tpu_custom_call.1} parent=1 // pred_check
      _
    $region39: #{tpu_custom_call.1} parent=1 // pred_check_branch
      %37 = sbr.rel (0) target = $region41
    $region40: #{tpu_custom_call.1} parent=1 // pred_region
      _
    $region41: #{tpu_custom_call.1} parent=1 // pred_fallthru
      _
    %v38 = vld [vmem:[%s0] sm:$0xff]
    %v39 = vld [vmem:[%s0 + $0x8] sm:$0xff]
    %v40 = vld [vmem:[%s0 + $0x10] sm:$0xff]
    %v41 = vld [vmem:[%s0 + $0x18] sm:$0xff]
    %vm42 = vcmask 523264
    %v43 = vsel %vm42, %v38, 0.0
    %44 = vadd.xlane.f32.xlu0 %v43
    %v45 = vpop.xlane.xlu0 %44
    %v46 = vsel %vm42, %v39, 0.0
    %47 = vadd.xlane.f32.xlu0 %v46
    %v48 = vpop.xlane.xlu0 %47
    %v49 = vsel %vm42, %v40, 0.0
    %50 = vadd.xlane.f32.xlu0 %v49
    %v51 = vpop.xlane.xlu0 %50
    %v52 = vsel %vm42, %v41, 0.0
    %53 = vadd.xlane.f32.xlu0 %v52
    %v54 = vpop.xlane.xlu0 %53
    %v55 = vld [vmem:[%s2] sm:$0xff]
    %v56 = vld [vmem:[%s2 + $0x8] sm:$0xff]
    %v57 = vld [vmem:[%s2 + $0x10] sm:$0xff]
    %v58 = vld [vmem:[%s2 + $0x18] sm:$0xff]
    %v59 = vld [vmem:[%s1] sm:$0xff]
    %v60 = vld [vmem:[%s1 + $0x8] sm:$0xff]
    %v61 = vld [vmem:[%s1 + $0x10] sm:$0xff]
    %v62 = vld [vmem:[%s1 + $0x18] sm:$0xff]
    %v63 = vld [vmem:[%s3] sm:$0xff]
    %v64 = vld [vmem:[%s3 + $0x8] sm:$0xff]
    %v65 = vld [vmem:[%s3 + $0x10] sm:$0xff]
    %v66 = vld [vmem:[%s3 + $0x18] sm:$0xff]
    %vm67 = vcmask 261120
    %v69 = vsel %vm67, %v55, 0
    %v72 = vsel %vm67, %v56, 0
    %v75 = vsel %vm67, %v57, 0
    %v78 = vsel %vm67, %v58, 0
    %80 = vmatprep.subr.mxu0 0.0
    %81 = vmatpush1.msra.mxu0 0.0
    %82 = vmatprep.subr.mxu0 0.0
    %83 = vmatpush1.msra.mxu0 0.0
    %84 = vmatprep.subr.mxu0 0.0
    %85 = vmatpush1.msra.mxu0 0.0
    %86 = vmatprep.subr.mxu0 0.0
    %87 = vmatpush1.msra.mxu0 0.0
    %88 = vmatprep.subr.mxu0 0.0
    %89 = vmatpush1.msra.mxu0 0.0
    %90 = vmatprep.subr.mxu0 0.0
    %91 = vmatpush1.msra.mxu0 0.0
    %92 = vmatprep.subr.mxu0 0.0
    %93 = vmatpush1.msra.mxu0 0.0
    %94 = vmatprep.subr.mxu0 0.0
    %95 = vmatpush1.msra.mxu0 0.0
    %96 = vmatprep.subr.mxu0 0.0
    %97 = vmatpush1.msra.mxu0 0.0
    %98 = vmatprep.subr.mxu0 0.0
    %99 = vmatpush1.msra.mxu0 0.0
    %100 = vmatprep.subr.mxu0 0.0
    %101 = vmatpush1.msra.mxu0 0.0
    %102 = vmatprep.subr.mxu0 0.0
    %103 = vmatpush1.msra.mxu0 0.0
    %104 = vmatprep.subr.mxu0 0.0
    %105 = vmatpush1.msra.mxu0 %v62
    %106 = vmatprep.subr.mxu0 0.0
    %107 = vmatpush1.msra.mxu0 %v61
    %108 = vmatprep.subr.mxu0 0.0
    %109 = vmatpush1.msra.mxu0 %v60
    %110 = vmatprep.subr.mxu0 0.0
    %111 = vmatpush1.msra.mxu0 %v59
    %112 = vmatprep.subr.mxu0 0.0
    %113 = vmatpush2.msra.mxu0 0.0
    %114 = vmatprep.subr.mxu0 0.0
    %115 = vmatpush2.msra.mxu0 0.0
    %116 = vmatprep.subr.mxu0 0.0
    %117 = vmatpush2.msra.mxu0 0.0
    %118 = vmatprep.subr.mxu0 0.0
    %119 = vmatpush2.msra.mxu0 0.0
    %120 = vmatprep.subr.mxu0 0.0
    %121 = vmatpush2.msra.mxu0 0.0
    %122 = vmatprep.subr.mxu0 0.0
    %123 = vmatpush2.msra.mxu0 0.0
    %124 = vmatprep.subr.mxu0 0.0
    %125 = vmatpush2.msra.mxu0 0.0
    %126 = vmatprep.subr.mxu0 0.0
    %127 = vmatpush2.msra.mxu0 0.0
    %128 = vmatprep.subr.mxu0 0.0
    %129 = vmatpush2.msra.mxu0 0.0
    %130 = vmatprep.subr.mxu0 0.0
    %131 = vmatpush2.msra.mxu0 0.0
    %132 = vmatprep.subr.mxu0 0.0
    %133 = vmatpush2.msra.mxu0 0.0
    %134 = vmatprep.subr.mxu0 0.0
    %135 = vmatpush2.msra.mxu0 0.0
    %136 = vmatprep.subr.mxu0 0.0
    %137 = vmatpush2.msra.mxu0 0.0
    %138 = vmatprep.subr.mxu0 0.0
    %139 = vmatpush2.msra.mxu0 0.0
    %140 = vmatprep.subr.mxu0 0.0
    %141 = vmatpush2.msra.mxu0 0.0
    %142 = vmatprep.subr.mxu0 0.0
    %143 = vmatpush2.msra.mxu0 0.0
    %144 = vmatprep.mubr.f32.mxu0 0.0
    %145 = vmatmul.mubr.f32.gmra.mxu0 %v69
    %v146 = vpop.f32.mrf.mxu0
    %v147 = vadd.f32 %v63, %v146
    %v148 = vpop.f32.mrf.mxu0
    %149 = vmatprep.mubr.f32.mxu0 0.0
    %150 = vmatmul.mubr.f32.gmra.mxu0 %v72
    %v151 = vpop.f32.mrf.mxu0
    %v152 = vadd.f32 %v64, %v151
    %v153 = vpop.f32.mrf.mxu0
    %154 = vmatprep.mubr.f32.mxu0 0.0
    %155 = vmatmul.mubr.f32.gmra.mxu0 %v75
    %v156 = vpop.f32.mrf.mxu0
    %v157 = vadd.f32 %v65, %v156
    %v158 = vpop.f32.mrf.mxu0
    %159 = vmatprep.mubr.f32.mxu0 0.0
    %160 = vmatmul.mubr.f32.gmra.mxu0 %v78
    %v161 = vpop.f32.mrf.mxu0
    %v162 = vadd.f32 %v66, %v161
    %v163 = vpop.f32.mrf.mxu0
    %164 = vdwg.mxu0
    %v165 = vld [vmem:[%s4] sm:$0xff]
    %v166 = vld [vmem:[%s4 + $0x8] sm:$0xff]
    %v167 = vld [vmem:[%s4 + $0x10] sm:$0xff]
    %v168 = vld [vmem:[%s4 + $0x18] sm:$0xff]
    %v169 = vld [vmem:[%s5] sm:$0xff]
    %v170 = vld [vmem:[%s5 + $0x8] sm:$0xff]
    %v171 = vld [vmem:[%s5 + $0x10] sm:$0xff]
    %v172 = vld [vmem:[%s5 + $0x18] sm:$0xff]
    %v174 = vsel %vm67, %v165, 0
    %v177 = vsel %vm67, %v166, 0
    %v180 = vsel %vm67, %v167, 0
    %v183 = vsel %vm67, %v168, 0
    %185 = vmatprep.subr.mxu0 0.0
    %186 = vmatpush1.msra.mxu0 0.0
    %187 = vmatprep.subr.mxu0 0.0
    %188 = vmatpush1.msra.mxu0 0.0
    %189 = vmatprep.subr.mxu0 0.0
    %190 = vmatpush1.msra.mxu0 0.0
    %191 = vmatprep.subr.mxu0 0.0
    %192 = vmatpush1.msra.mxu0 0.0
    %193 = vmatprep.subr.mxu0 0.0
    %194 = vmatpush1.msra.mxu0 0.0
    %195 = vmatprep.subr.mxu0 0.0
    %196 = vmatpush1.msra.mxu0 0.0
    %197 = vmatprep.subr.mxu0 0.0
    %198 = vmatpush1.msra.mxu0 0.0
    %199 = vmatprep.subr.mxu0 0.0
    %200 = vmatpush1.msra.mxu0 0.0
    %201 = vmatprep.subr.mxu0 0.0
    %202 = vmatpush1.msra.mxu0 0.0
    %203 = vmatprep.subr.mxu0 0.0
    %204 = vmatpush1.msra.mxu0 0.0
    %205 = vmatprep.subr.mxu0 0.0
    %206 = vmatpush1.msra.mxu0 0.0
    %207 = vmatprep.subr.mxu0 0.0
    %208 = vmatpush1.msra.mxu0 0.0
    %209 = vmatprep.subr.mxu0 0.0
    %210 = vmatpush1.msra.mxu0 %v54
    %211 = vmatprep.subr.mxu0 0.0
    %212 = vmatpush1.msra.mxu0 %v51
    %213 = vmatprep.subr.mxu0 0.0
    %214 = vmatpush1.msra.mxu0 %v48
    %215 = vmatprep.subr.mxu0 0.0
    %216 = vmatpush1.msra.mxu0 %v45
    %217 = vmatprep.subr.mxu0 0.0
    %218 = vmatpush2.msra.mxu0 0.0
    %219 = vmatprep.subr.mxu0 0.0
    %220 = vmatpush2.msra.mxu0 0.0
    %221 = vmatprep.subr.mxu0 0.0
    %222 = vmatpush2.msra.mxu0 0.0
    %223 = vmatprep.subr.mxu0 0.0
    %224 = vmatpush2.msra.mxu0 0.0
    %225 = vmatprep.subr.mxu0 0.0
    %226 = vmatpush2.msra.mxu0 0.0
    %227 = vmatprep.subr.mxu0 0.0
    %228 = vmatpush2.msra.mxu0 0.0
    %229 = vmatprep.subr.mxu0 0.0
    %230 = vmatpush2.msra.mxu0 0.0
    %231 = vmatprep.subr.mxu0 0.0
    %232 = vmatpush2.msra.mxu0 0.0
    %233 = vmatprep.subr.mxu0 0.0
    %234 = vmatpush2.msra.mxu0 0.0
    %235 = vmatprep.subr.mxu0 0.0
    %236 = vmatpush2.msra.mxu0 0.0
    %237 = vmatprep.subr.mxu0 0.0
    %238 = vmatpush2.msra.mxu0 0.0
    %239 = vmatprep.subr.mxu0 0.0
    %240 = vmatpush2.msra.mxu0 0.0
    %241 = vmatprep.subr.mxu0 0.0
    %242 = vmatpush2.msra.mxu0 0.0
    %243 = vmatprep.subr.mxu0 0.0
    %244 = vmatpush2.msra.mxu0 0.0
    %245 = vmatprep.subr.mxu0 0.0
    %246 = vmatpush2.msra.mxu0 0.0
    %247 = vmatprep.subr.mxu0 0.0
    %248 = vmatpush2.msra.mxu0 0.0
    %249 = vmatprep.mubr.f32.mxu0 0.0
    %250 = vmatmul.mubr.f32.gmra.mxu0 %v174
    %v251 = vpop.f32.mrf.mxu0
    %v252 = vadd.f32 %v169, %v251
    %v253 = vpop.f32.mrf.mxu0
    %254 = vmatprep.mubr.f32.mxu0 0.0
    %255 = vmatmul.mubr.f32.gmra.mxu0 %v177
    %v256 = vpop.f32.mrf.mxu0
    %v257 = vadd.f32 %v170, %v256
    %v258 = vpop.f32.mrf.mxu0
    %259 = vmatprep.mubr.f32.mxu0 0.0
    %260 = vmatmul.mubr.f32.gmra.mxu0 %v180
    %v261 = vpop.f32.mrf.mxu0
    %v262 = vadd.f32 %v171, %v261
    %v263 = vpop.f32.mrf.mxu0
    %264 = vmatprep.mubr.f32.mxu0 0.0
    %265 = vmatmul.mubr.f32.gmra.mxu0 %v183
    %v266 = vpop.f32.mrf.mxu0
    %v267 = vadd.f32 %v172, %v266
    %v268 = vpop.f32.mrf.mxu0
    %269 = vdwg.mxu0
    %v270 = vmul.f32 %v147, %v252
    %v271 = vmul.f32 %v152, %v257
    %v272 = vmul.f32 %v157, %v262
    %v273 = vmul.f32 %v162, %v267
    %v274 = vld [vmem:[%s6] sm:$0xff]
    %v275 = vld [vmem:[%s6 + $0x8] sm:$0xff]
    %v276 = vld [vmem:[%s6 + $0x10] sm:$0xff]
    %v277 = vld [vmem:[%s6 + $0x18] sm:$0xff]
    %v278 = vld [vmem:[%s7] sm:$0xff]
    %v279 = vld [vmem:[%s7 + $0x8] sm:$0xff]
    %v280 = vld [vmem:[%s7 + $0x10] sm:$0xff]
    %v281 = vld [vmem:[%s7 + $0x18] sm:$0xff]
    %283 = vset.pattern.permute.xlu0 0
    %284 = vperm.xlu0 %283, %v278
    %v285 = vpop.permute.xlu0 %284
    %288 = vset.pattern.permute.xlu0 0
    %289 = vperm.xlu0 %288, %v279
    %v290 = vpop.permute.xlu0 %289
    %293 = vset.pattern.permute.xlu0 0
    %294 = vperm.xlu0 %293, %v280
    %v295 = vpop.permute.xlu0 %294
    %298 = vset.pattern.permute.xlu0 0
    %299 = vperm.xlu0 %298, %v281
    %v300 = vpop.permute.xlu0 %299
    %v303 = vsel %vm67, %v274, 0
    %v306 = vsel %vm67, %v275, 0
    %v309 = vsel %vm67, %v276, 0
    %v312 = vsel %vm67, %v277, 0
    %314 = vmatprep.subr.mxu0 0.0
    %315 = vmatpush1.msra.mxu0 0.0
    %316 = vmatprep.subr.mxu0 0.0
    %317 = vmatpush1.msra.mxu0 0.0
    %318 = vmatprep.subr.mxu0 0.0
    %319 = vmatpush1.msra.mxu0 0.0
    %320 = vmatprep.subr.mxu0 0.0
    %321 = vmatpush1.msra.mxu0 0.0
    %322 = vmatprep.subr.mxu0 0.0
    %323 = vmatpush1.msra.mxu0 0.0
    %324 = vmatprep.subr.mxu0 0.0
    %325 = vmatpush1.msra.mxu0 0.0
    %326 = vmatprep.subr.mxu0 0.0
    %327 = vmatpush1.msra.mxu0 0.0
    %328 = vmatprep.subr.mxu0 0.0
    %329 = vmatpush1.msra.mxu0 0.0
    %330 = vmatprep.subr.mxu0 0.0
    %331 = vmatpush1.msra.mxu0 0.0
    %332 = vmatprep.subr.mxu0 0.0
    %333 = vmatpush1.msra.mxu0 0.0
    %334 = vmatprep.subr.mxu0 0.0
    %335 = vmatpush1.msra.mxu0 0.0
    %336 = vmatprep.subr.mxu0 0.0
    %337 = vmatpush1.msra.mxu0 0.0
    %338 = vmatprep.subr.mxu0 0.0
    %339 = vmatpush1.msra.mxu0 %v41
    %340 = vmatprep.subr.mxu0 0.0
    %341 = vmatpush1.msra.mxu0 %v40
    %342 = vmatprep.subr.mxu0 0.0
    %343 = vmatpush1.msra.mxu0 %v39
    %344 = vmatprep.subr.mxu0 0.0
    %345 = vmatpush1.msra.mxu0 %v38
    %346 = vmatprep.subr.mxu0 0.0
    %347 = vmatpush2.msra.mxu0 0.0
    %348 = vmatprep.subr.mxu0 0.0
    %349 = vmatpush2.msra.mxu0 0.0
    %350 = vmatprep.subr.mxu0 0.0
    %351 = vmatpush2.msra.mxu0 0.0
    %352 = vmatprep.subr.mxu0 0.0
    %353 = vmatpush2.msra.mxu0 0.0
    %354 = vmatprep.subr.mxu0 0.0
    %355 = vmatpush2.msra.mxu0 0.0
    %356 = vmatprep.subr.mxu0 0.0
    %357 = vmatpush2.msra.mxu0 0.0
    %358 = vmatprep.subr.mxu0 0.0
    %359 = vmatpush2.msra.mxu0 0.0
    %360 = vmatprep.subr.mxu0 0.0
    %361 = vmatpush2.msra.mxu0 0.0
    %362 = vmatprep.subr.mxu0 0.0
    %363 = vmatpush2.msra.mxu0 0.0
    %364 = vmatprep.subr.mxu0 0.0
    %365 = vmatpush2.msra.mxu0 0.0
    %366 = vmatprep.subr.mxu0 0.0
    %367 = vmatpush2.msra.mxu0 0.0
    %368 = vmatprep.subr.mxu0 0.0
    %369 = vmatpush2.msra.mxu0 0.0
    %370 = vmatprep.subr.mxu0 0.0
    %371 = vmatpush2.msra.mxu0 0.0
    %372 = vmatprep.subr.mxu0 0.0
    %373 = vmatpush2.msra.mxu0 0.0
    %374 = vmatprep.subr.mxu0 0.0
    %375 = vmatpush2.msra.mxu0 0.0
    %376 = vmatprep.subr.mxu0 0.0
    %377 = vmatpush2.msra.mxu0 0.0
    %378 = vmatprep.mubr.f32.mxu0 0.0
    %379 = vmatmul.mubr.f32.gmra.mxu0 %v303
    %v380 = vpop.f32.mrf.mxu0
    %v381 = vadd.f32 %v285, %v380
    %v382 = vpop.f32.mrf.mxu0
    %383 = vmatprep.mubr.f32.mxu0 0.0
    %384 = vmatmul.mubr.f32.gmra.mxu0 %v306
    %v385 = vpop.f32.mrf.mxu0
    %v386 = vadd.f32 %v290, %v385
    %v387 = vpop.f32.mrf.mxu0
    %388 = vmatprep.mubr.f32.mxu0 0.0
    %389 = vmatmul.mubr.f32.gmra.mxu0 %v309
    %v390 = vpop.f32.mrf.mxu0
    %v391 = vadd.f32 %v295, %v390
    %v392 = vpop.f32.mrf.mxu0
    %393 = vmatprep.mubr.f32.mxu0 0.0
    %394 = vmatmul.mubr.f32.gmra.mxu0 %v312
    %v395 = vpop.f32.mrf.mxu0
    %v396 = vadd.f32 %v300, %v395
    %v397 = vpop.f32.mrf.mxu0
    %398 = vdwg.mxu0
    %400 = vset.pattern.permute.xlu0 0
    %401 = vperm.xlu0 %400, %v270
    %v402 = vpop.permute.xlu0 %401
    %405 = vset.pattern.permute.xlu0 0
    %406 = vperm.xlu0 %405, %v271
    %v407 = vpop.permute.xlu0 %406
    %410 = vset.pattern.permute.xlu0 0
    %411 = vperm.xlu0 %410, %v272
    %v412 = vpop.permute.xlu0 %411
    %415 = vset.pattern.permute.xlu0 0
    %416 = vperm.xlu0 %415, %v273
    %v417 = vpop.permute.xlu0 %416
    %v419 = vmul.f32 %v402, %v381
    %v420 = vmul.f32 %v407, %v386
    %v421 = vmul.f32 %v412, %v391
    %v422 = vmul.f32 %v417, %v396
    %v423 = vmul.f32 %v419, %v419
    %v424 = vmul.f32 %v420, %v420
    %v425 = vmul.f32 %v421, %v421
    %v426 = vmul.f32 %v422, %v422
    %v427 = vsel %vm42, %v423, 0.0
    %v428 = vsel %vm42, %v424, 0.0
    %v429 = vadd.f32 %v427, %v428
    %v430 = vsel %vm42, %v425, 0.0
    %v431 = vadd.f32 %v429, %v430
    %v432 = vsel %vm42, %v426, 0.0
    %v433 = vadd.f32 %v431, %v432
    %v434 = vrot.slane %v433, 4
    %v435 = vadd.f32 %v433, %v434
    %v436 = vrot.slane %v435, 2
    %v437 = vadd.f32 %v435, %v436
    %v438 = vrot.slane %v437, 1
    %v439 = vadd.f32 %v437, %v438
    %v440 = vmax.f32 %v439, 1e-24
    %v441 = vrsqrt.pop %v440
    %v442 = vld [vmem:[%s8] sm:$0xff]
    %v443 = vld [vmem:[%s8 + $0x8] sm:$0xff]
    %v444 = vld [vmem:[%s8 + $0x10] sm:$0xff]
    %v445 = vld [vmem:[%s8 + $0x18] sm:$0xff]
    %447 = vset.pattern.permute.xlu0 0
    %448 = vperm.xlu0 %447, %v442
    %v449 = vpop.permute.xlu0 %448
    %452 = vset.pattern.permute.xlu0 0
    %453 = vperm.xlu0 %452, %v443
    %v454 = vpop.permute.xlu0 %453
    %457 = vset.pattern.permute.xlu0 0
    %458 = vperm.xlu0 %457, %v444
    %v459 = vpop.permute.xlu0 %458
    %462 = vset.pattern.permute.xlu0 0
    %463 = vperm.xlu0 %462, %v445
    %v464 = vpop.permute.xlu0 %463
    %v466 = vmul.f32 %v419, %v449
    %v467 = vmul.f32 %v420, %v454
    %v468 = vmul.f32 %v421, %v459
    %v469 = vmul.f32 %v422, %v464
    %v470 = vsel %vm42, %v466, 0.0
    %v471 = vsel %vm42, %v467, 0.0
    %v472 = vadd.f32 %v470, %v471
    %v473 = vsel %vm42, %v468, 0.0
    %v474 = vadd.f32 %v472, %v473
    %v475 = vsel %vm42, %v469, 0.0
    %v476 = vadd.f32 %v474, %v475
    %v477 = vrot.slane %v476, 4
    %v478 = vadd.f32 %v476, %v477
    %v479 = vrot.slane %v478, 2
    %v480 = vadd.f32 %v478, %v479
    %v481 = vrot.slane %v480, 1
    %v482 = vadd.f32 %v480, %v481
    %v483 = vmul.f32 %v482, %v441
    %v484 = vld [vmem:[#allocation2] sm:$0x1]
    %486 = vset.pattern.permute.xlu0 0
    %487 = vperm.xlu0 %486, %v484
    %v488 = vpop.permute.xlu0 %487
    %v490 = vlaneseq
    %v491 = vshrl.u32 %v490, 7
    %v492 = vsub.s32 0, %v491
    %v493 = vrot.slane %v488, %v492
    %v494 = vadd.f32 %v483, %v493
    %vm495 = vcmask 516096
    %496 = vst.msk [vmem:[#allocation3] sm:$0x1] %vm495, %v494
    // Predicated region
    $region42: #{tpu_custom_call.1} parent=1 // pred_check
      _
    $region43: #{tpu_custom_call.1} parent=1 // pred_check_branch
      %498 = sbr.rel (0) target = $region45
    $region44: #{tpu_custom_call.1} parent=1 // pred_region
      %s500 = ssub.s32 16, 16
      %501 = vsyncadd [#allocation4], %s500
      %s503 = sshll.u32 [#allocation3], 4
      %s504 = int_to_ptr.vmem [resolvable:$true] %s503
      %506 = dma.vmem_to_hbm [thread:$0]  %s504, 16, %s10, [#allocation4]
    $region45: #{tpu_custom_call.1} parent=1 // pred_fallthru
      _
    // Predicated region
    $region46: #{tpu_custom_call.1} parent=1 // pred_check
      _
    $region47: #{tpu_custom_call.1} parent=1 // pred_check_branch
      %508 = sbr.rel (0) target = $region49
    $region48: #{tpu_custom_call.1} parent=1 // pred_region
      %509 = dma.done [#allocation4], 16
    $region49: #{tpu_custom_call.1} parent=1 // pred_fallthru
      _
    %510 = vsyncpa [#allocation4], 1

</llo_original>
